<compile_context>
chip_gen: v7x
topology: tpu7x:2x2x1
jax: 0.10.0
libtpu: 0.0.40
codegen_flags: <defaults>
</compile_context>

<pallas_src>
import functools

import jax
import jax.numpy as jnp
from jax.experimental import pallas as pl
from jax.experimental.pallas import tpu as pltpu


def _gelu(x):
    # TODO(synk): PyTorch F.gelu default is exact erf-gelu; tanh approximation used here.
    c = jnp.asarray(0.7978845608028654, x.dtype)  # sqrt(2/pi)
    return 0.5 * x * (1.0 + jnp.tanh(c * (x + 0.044715 * x * x * x)))


def synthesis_kernel(num_heads, proj_dim, approx_recip,
                     user_ref, items_ref, qw_ref, kw_ref,
                     w0u_ref, wfa_ref, w1_ref, rows_ref, out_ref):
    H, P = num_heads, proj_dim
    user = user_ref[...]                     # [bt, d_u]   (matmul dtype)
    items = items_ref[...]                   # [bt, n, d_i] (matmul dtype)
    bt, n, d_i = items.shape
    h0 = wfa_ref.shape[1]
    out_dim = w1_ref.shape[1]
    mm_dtype = user_ref.dtype

    # Packed f32 rows: [4, W] = [b0', gamma0, beta0, b1(padded)]
    rows = rows_ref[...]
    b0 = rows[0:1, :h0]
    g0 = rows[1:2, :h0]
    be0 = rows[2:3, :h0]
    b1 = rows[3:4, :out_dim]

    # ---- Attention over neighbor items (Q from user, K from items, V = items) ----
    q = jnp.dot(user, qw_ref[...], preferred_element_type=jnp.float32)        # [bt, H*P]
    k = jnp.dot(items.reshape(bt * n, d_i), kw_ref[...],
                preferred_element_type=jnp.float32)                           # [bt*n, H*P]
    inv_sqrt_p = jnp.float32(1.0 / (P ** 0.5))
    items_f32 = items.astype(jnp.float32)

    if H == 1:
        # Specialized H==1 path: stay 2-D/3-D, no head interleaving.
        k3 = k.reshape(bt, n, P)                                              # [bt, n, P]
        scores = jnp.sum(q[:, None, :] * k3, axis=-1) * inv_sqrt_p            # [bt, n]
        scores = scores - jnp.max(scores, axis=-1, keepdims=True)
        e = jnp.exp(scores)
        wgt = e * pl.reciprocal(jnp.sum(e, axis=-1, keepdims=True),
                                approx=approx_recip)                          # [bt, n]
        # VPU weighted sum over neighbors (no tiny per-row MXU matmuls).
        agg = jnp.sum(wgt[:, :, None] * items_f32, axis=1)                    # [bt, d_i]
    else:
        # General path; matches the torch .view(B, H, -1, P) chain semantics.
        Q = q.reshape(bt, H, 1, P)
        K = k.reshape(bt, n, H * P).reshape(bt, H, n, P)
        scores = jnp.sum(Q * K, axis=-1) * inv_sqrt_p                         # [bt, H, n]
        scores = scores - jnp.max(scores, axis=-1, keepdims=True)
        e = jnp.exp(scores)
        wgt = e * pl.reciprocal(jnp.sum(e, axis=-1, keepdims=True),
                                approx=approx_recip)
        agg = jnp.sum(wgt[:, :, :, None] * items_f32[:, None, :, :], axis=2)  # [bt, H, d_i]
        agg = agg.reshape(bt, H * d_i)

    # ---- MLP on concat([user, agg_fc]) with mha_fc folded into layer 0 ----
    # concat avoided: W0 split row-wise; fc folded: agg_raw @ (fcw@W0a) + (fcb@W0a + b0).
    h = (jnp.dot(user, w0u_ref[...], preferred_element_type=jnp.float32)
         + jnp.dot(agg.astype(mm_dtype), wfa_ref[...],
                   preferred_element_type=jnp.float32)
         + b0)                                                                # [bt, h0]
    mu = jnp.mean(h, axis=-1, keepdims=True)
    var = jnp.mean((h - mu) * (h - mu), axis=-1, keepdims=True)
    h = (h - mu) * jax.lax.rsqrt(var + 1e-5)
    h = h * g0 + be0
    h = _gelu(h)
    out = jnp.dot(h.astype(mm_dtype), w1_ref[...],
                  preferred_element_type=jnp.float32) + b1                    # [bt, out_dim]
    out_ref[...] = out.astype(out_ref.dtype)


def _pick_block_b(B, cap=512):
    """Largest batch tile <= cap that divides B (multiple of 16 for bf16 packing)."""
    if B <= cap:
        return B
    bt = (cap // 16) * 16
    while bt >= 16:
        if B % bt == 0:
            return bt
        bt -= 16
    return B  # fall back: whole batch resident


def _pack_rows(rows, width):
    """Stack 1-D f32 vectors as rows of a single [len(rows), width] array."""
    out = []
    for r in rows:
        r = jnp.asarray(r, jnp.float32).reshape(1, -1)
        pad = width - r.shape[1]
        if pad:
            r = jnp.pad(r, ((0, 0), (0, pad)))
        out.append(r)
    return jnp.concatenate(out, axis=0)


@functools.partial(jax.jit, static_argnames=("num_heads", "proj_dim", "matmul_dtype"))
def user_attention_synthesis(user, items, params, *, num_heads, proj_dim,
                             matmul_dtype=jnp.bfloat16):
    B, d_u = user.shape
    _, n, d_i = items.shape
    H, P = num_heads, proj_dim
    h0 = params["w0"].shape[1]
    out_dim = params["w1"].shape[1]
    approx_recip = matmul_dtype != jnp.float32

    # Fold mha_fc into MLP layer 0 (valid: no nonlinearity between them).
    w0 = params["w0"].astype(jnp.float32)
    w0u, w0a = w0[:d_u], w0[d_u:]
    wfa = params["fcw"].astype(jnp.float32) @ w0a                # [H*d_i, h0]
    b0p = params["fcb"].astype(jnp.float32) @ w0a + params["b0"]  # [h0]

    W = max(h0, out_dim)
    rows = _pack_rows([b0p, params["g0"], params["be0"], params["b1"]], W)

    mm = lambda x: x.astype(matmul_dtype)
    args = (mm(user), mm(items), mm(params["qw"]), mm(params["kw"]),
            mm(w0u), mm(wfa), mm(params["w1"]), rows)

    bt = _pick_block_b(B)
    grid = (B // bt,)

    kernel = functools.partial(synthesis_kernel, H, P, approx_recip)
    grid_spec = pltpu.PrefetchScalarGridSpec(
        num_scalar_prefetch=0,
        grid=grid,
        in_specs=[
            pl.BlockSpec((bt, d_u), lambda i: (i, 0)),        # user: streamed
            pl.BlockSpec((bt, n, d_i), lambda i: (i, 0, 0)),  # items: streamed
            pl.BlockSpec((d_u, H * P), lambda i: (0, 0)),     # qw: resident
            pl.BlockSpec((d_i, H * P), lambda i: (0, 0)),     # kw: resident
            pl.BlockSpec((d_u, h0), lambda i: (0, 0)),        # w0 (user rows): resident
            pl.BlockSpec((H * d_i, h0), lambda i: (0, 0)),    # fc-folded weight: resident
            pl.BlockSpec((h0, out_dim), lambda i: (0, 0)),    # w1: resident
            pl.BlockSpec((4, W), lambda i: (0, 0)),           # packed bias/affine rows
        ],
        out_specs=pl.BlockSpec((bt, out_dim), lambda i: (i, 0)),
    )
    return pl.pallas_call(
        kernel,
        out_shape=jax.ShapeDtypeStruct((B, out_dim), jnp.float32),
        grid_spec=grid_spec,
        compiler_params=pltpu.CompilerParams(dimension_semantics=("parallel",)),
    )(*args)


def init_params(key, d_u, d_i, proj_dim, user_embed_dim, hidden_dims, num_heads):
    H, P = num_heads, proj_dim
    ks = jax.random.split(key, 8)
    s = 0.05
    dims = [d_u + H * d_i] + list(hidden_dims) + [user_embed_dim]
    assert len(hidden_dims) == 1, "kernel hard-codes a single hidden MLP layer"
    h0 = dims[1]
    return dict(
        qw=jax.random.normal(ks[0], (d_u, H * P), jnp.float32) * s,
        kw=jax.random.normal(ks[1], (d_i, H * P), jnp.float32) * s,
        fcw=jax.random.normal(ks[2], (H * d_i, H * d_i), jnp.float32) * s,
        fcb=jax.random.normal(ks[3], (H * d_i,), jnp.float32) * s,
        w0=jax.random.normal(ks[4], (dims[0], h0), jnp.float32) * s,
        b0=jax.random.normal(ks[5], (h0,), jnp.float32) * s,
        g0=jnp.ones((h0,), jnp.float32),
        be0=jnp.zeros((h0,), jnp.float32),
        w1=jax.random.normal(ks[6], (h0, dims[2]), jnp.float32) * s,
        b1=jax.random.normal(ks[7], (dims[2],), jnp.float32) * s,
    )


def reference(user, items, params, num_heads, proj_dim):
    # Pure-JAX, unfused f32 mirror of the PyTorch forward (for validation).
    H, P = num_heads, proj_dim
    B, d_u = user.shape
    _, n, d_i = items.shape
    q = user @ params["qw"]
    k = (items.reshape(B * n, d_i) @ params["kw"]).reshape(B, n, H * P)
    Q = q.reshape(B, H, 1, P)
    K = k.reshape(B, H, n, P)
    scores = jnp.squeeze(Q @ jnp.swapaxes(K, 2, 3), axis=2) / (P ** 0.5)
    w = jax.nn.softmax(scores, axis=-1)
    agg = jnp.einsum('bhn,bnd->bhd', w, items).reshape(B, H * d_i)
    agg = agg @ params["fcw"] + params["fcb"]
    comb = jnp.concatenate([user, agg], axis=1)
    h = comb @ params["w0"] + params["b0"]
    mu = h.mean(-1, keepdims=True)
    var = ((h - mu) ** 2).mean(-1, keepdims=True)
    h = (h - mu) / jnp.sqrt(var + 1e-5)
    h = h * params["g0"] + params["be0"]
    h = _gelu(h)
    return h @ params["w1"] + params["b1"]


if __name__ == "__main__":
    B, n = 8, 8
    d_u, d_i, P = 16, 32, 16
    user_embed_dim = 32
    hidden_dims = [64]
    H = 1

    key = jax.random.PRNGKey(0)
    k1, k2, k3 = jax.random.split(key, 3)
    user = jax.random.normal(k1, (B, d_u), jnp.float32)
    items = jax.random.normal(k2, (B, n, d_i), jnp.float32)
    params = init_params(k3, d_u, d_i, P, user_embed_dim, hidden_dims, H)

    ref = reference(user, items, params, H, P)

    # Full-f32 run: tight check of the fused-kernel algebra (fc fold, packed biases, ...).
    out_f32 = user_attention_synthesis(user, items, params, num_heads=H, proj_dim=P,
                                       matmul_dtype=jnp.float32)
    out_f32 = jax.block_until_ready(out_f32)
    assert out_f32.shape == (B, user_embed_dim)
    if not jnp.allclose(out_f32, ref, atol=1e-4, rtol=1e-4):
        raise AssertionError("f32 Pallas kernel output mismatch vs JAX reference")

    # Default bf16-matmul run (MXU-native on v6e/v7x); looser tolerance for bf16 operands.
    out_bf16 = user_attention_synthesis(user, items, params, num_heads=H, proj_dim=P)
    out_bf16 = jax.block_until_ready(out_bf16)
    assert out_bf16.shape == (B, user_embed_dim)
    if not jnp.allclose(out_bf16, ref, atol=1e-1, rtol=1e-1):
        raise AssertionError("bf16 Pallas kernel output mismatch vs JAX reference")

    print("KERNEL_OK")
</pallas_src>

<mosaic_0001>
module attributes {stable_mosaic.version = 11 : i64} {
  func.func @synthesis_kernel(%arg0: i32, %arg1: memref<8x16xf32, #tpu.memory_space<vmem>>, %arg2: memref<8x8x32xf32, #tpu.memory_space<vmem>>, %arg3: memref<16x16xf32, #tpu.memory_space<vmem>>, %arg4: memref<32x16xf32, #tpu.memory_space<vmem>>, %arg5: memref<16x64xf32, #tpu.memory_space<vmem>>, %arg6: memref<32x64xf32, #tpu.memory_space<vmem>>, %arg7: memref<64x32xf32, #tpu.memory_space<vmem>>, %arg8: memref<4x64xf32, #tpu.memory_space<vmem>>, %arg9: memref<8x32xf32, #tpu.memory_space<vmem>>) attributes {dimension_semantics = [#tpu.dimension_semantics<parallel>], iteration_bounds = array<i64: 1>, scalar_prefetch = 0 : i64, scratch_operands = 0 : i64, tpu.core_type = #tpu.core_type<tc>, window_params = [{transform_indices = @transform_0, window_bounds = array<i64: 8, 16>}, {transform_indices = @transform_1, window_bounds = array<i64: 8, 8, 32>}, {pipeline_mode = #tpu.pipeline_mode<synchronous>, transform_indices = @transform_2, window_bounds = array<i64: 16, 16>}, {pipeline_mode = #tpu.pipeline_mode<synchronous>, transform_indices = @transform_3, window_bounds = array<i64: 32, 16>}, {pipeline_mode = #tpu.pipeline_mode<synchronous>, transform_indices = @transform_4, window_bounds = array<i64: 16, 64>}, {pipeline_mode = #tpu.pipeline_mode<synchronous>, transform_indices = @transform_5, window_bounds = array<i64: 32, 64>}, {pipeline_mode = #tpu.pipeline_mode<synchronous>, transform_indices = @transform_6, window_bounds = array<i64: 64, 32>}, {pipeline_mode = #tpu.pipeline_mode<synchronous>, transform_indices = @transform_7, window_bounds = array<i64: 4, 64>}, {transform_indices = @transform_8, window_bounds = array<i64: 8, 32>}]} {
    %c0 = arith.constant 0 : index
    %c0_0 = arith.constant 0 : index
    %0 = vector.load %arg1[%c0, %c0_0] : memref<8x16xf32, #tpu.memory_space<vmem>>, vector<8x16xf32>
    %c0_1 = arith.constant 0 : index
    %c0_2 = arith.constant 0 : index
    %c0_3 = arith.constant 0 : index
    %1 = vector.load %arg2[%c0_1, %c0_2, %c0_3] : memref<8x8x32xf32, #tpu.memory_space<vmem>>, vector<8x8x32xf32>
    %c0_4 = arith.constant 0 : index
    %c0_5 = arith.constant 0 : index
    %2 = vector.load %arg8[%c0_4, %c0_5] : memref<4x64xf32, #tpu.memory_space<vmem>>, vector<4x64xf32>
    %3 = vector.extract_strided_slice %2 {offsets = [0, 0], sizes = [1, 64], strides = [1, 1]} : vector<4x64xf32> to vector<1x64xf32>
    %4 = vector.extract_strided_slice %2 {offsets = [1, 0], sizes = [1, 64], strides = [1, 1]} : vector<4x64xf32> to vector<1x64xf32>
    %5 = vector.extract_strided_slice %2 {offsets = [2, 0], sizes = [1, 64], strides = [1, 1]} : vector<4x64xf32> to vector<1x64xf32>
    %6 = vector.extract_strided_slice %2 {offsets = [3, 0], sizes = [1, 32], strides = [1, 1]} : vector<4x64xf32> to vector<1x32xf32>
    %c0_6 = arith.constant 0 : index
    %c0_7 = arith.constant 0 : index
    %7 = vector.load %arg3[%c0_6, %c0_7] : memref<16x16xf32, #tpu.memory_space<vmem>>, vector<16x16xf32>
    %cst = arith.constant dense<0.000000e+00> : vector<8x16xf32>
    %8 = tpu.matmul %0, %7, %cst {dimension_numbers = #tpu.dot_dimension_numbers<[1], [0], [0], [1], [0, 0, 1, 1], [], []>} : vector<8x16xf32>, vector<16x16xf32>, vector<8x16xf32> -> vector<8x16xf32>
    %9 = vector.shape_cast %1 : vector<8x8x32xf32> to vector<64x32xf32>
    %c0_8 = arith.constant 0 : index
    %c0_9 = arith.constant 0 : index
    %10 = vector.load %arg4[%c0_8, %c0_9] : memref<32x16xf32, #tpu.memory_space<vmem>>, vector<32x16xf32>
    %cst_10 = arith.constant dense<0.000000e+00> : vector<64x16xf32>
    %11 = tpu.matmul %9, %10, %cst_10 {dimension_numbers = #tpu.dot_dimension_numbers<[1], [0], [0], [1], [0, 0, 1, 1], [], []>} : vector<64x32xf32>, vector<32x16xf32>, vector<64x16xf32> -> vector<64x16xf32>
    %12 = vector.shape_cast %11 : vector<64x16xf32> to vector<8x8x16xf32>
    %13 = vector.shape_cast %8 : vector<8x16xf32> to vector<8x1x16xf32>
    %14 = vector.broadcast %13 : vector<8x1x16xf32> to vector<8x8x16xf32>
    %15 = arith.mulf %14, %12 : vector<8x8x16xf32>
    %cst_11 = arith.constant dense<0.000000e+00> : vector<8x8xf32>
    %16 = vector.multi_reduction <add>, %15, %cst_11 [2] : vector<8x8x16xf32> to vector<8x8xf32>
    %cst_12 = arith.constant 2.500000e-01 : f32
    %17 = vector.broadcast %cst_12 : f32 to vector<8x8xf32>
    %18 = arith.mulf %16, %17 : vector<8x8xf32>
    %cst_13 = arith.constant dense<0xFF800000> : vector<8xf32>
    %19 = vector.multi_reduction <maximumf>, %18, %cst_13 [1] : vector<8x8xf32> to vector<8xf32>
    %20 = vector.shape_cast %19 : vector<8xf32> to vector<8x1xf32>
    %21 = vector.broadcast %20 : vector<8x1xf32> to vector<8x8xf32>
    %22 = arith.subf %18, %21 : vector<8x8xf32>
    %23 = math.exp %22 : vector<8x8xf32>
    %cst_14 = arith.constant dense<0.000000e+00> : vector<8xf32>
    %24 = vector.multi_reduction <add>, %23, %cst_14 [1] : vector<8x8xf32> to vector<8xf32>
    %25 = vector.shape_cast %24 : vector<8xf32> to vector<8x1xf32>
    %26 = tpu.reciprocal %25 : vector<8x1xf32> -> vector<8x1xf32>
    %27 = vector.broadcast %26 : vector<8x1xf32> to vector<8x8xf32>
    %28 = arith.mulf %23, %27 : vector<8x8xf32>
    %29 = vector.shape_cast %28 : vector<8x8xf32> to vector<8x8x1xf32>
    %30 = vector.broadcast %29 : vector<8x8x1xf32> to vector<8x8x32xf32>
    %31 = arith.mulf %30, %1 : vector<8x8x32xf32>
    %cst_15 = arith.constant dense<0.000000e+00> : vector<8x32xf32>
    %32 = vector.multi_reduction <add>, %31, %cst_15 [1] : vector<8x8x32xf32> to vector<8x32xf32>
    %c0_16 = arith.constant 0 : index
    %c0_17 = arith.constant 0 : index
    %33 = vector.load %arg5[%c0_16, %c0_17] : memref<16x64xf32, #tpu.memory_space<vmem>>, vector<16x64xf32>
    %cst_18 = arith.constant dense<0.000000e+00> : vector<8x64xf32>
    %34 = tpu.matmul %0, %33, %cst_18 {dimension_numbers = #tpu.dot_dimension_numbers<[1], [0], [0], [1], [0, 0, 1, 1], [], []>} : vector<8x16xf32>, vector<16x64xf32>, vector<8x64xf32> -> vector<8x64xf32>
    %c0_19 = arith.constant 0 : index
    %c0_20 = arith.constant 0 : index
    %35 = vector.load %arg6[%c0_19, %c0_20] : memref<32x64xf32, #tpu.memory_space<vmem>>, vector<32x64xf32>
    %cst_21 = arith.constant dense<0.000000e+00> : vector<8x64xf32>
    %36 = tpu.matmul %32, %35, %cst_21 {dimension_numbers = #tpu.dot_dimension_numbers<[1], [0], [0], [1], [0, 0, 1, 1], [], []>} : vector<8x32xf32>, vector<32x64xf32>, vector<8x64xf32> -> vector<8x64xf32>
    %37 = arith.addf %34, %36 : vector<8x64xf32>
    %38 = vector.broadcast %3 : vector<1x64xf32> to vector<8x64xf32>
    %39 = arith.addf %37, %38 : vector<8x64xf32>
    %cst_22 = arith.constant dense<0.000000e+00> : vector<8xf32>
    %40 = vector.multi_reduction <add>, %39, %cst_22 [1] : vector<8x64xf32> to vector<8xf32>
    %41 = vector.shape_cast %40 : vector<8xf32> to vector<8x1xf32>
    %cst_23 = arith.constant 6.400000e+01 : f32
    %42 = vector.broadcast %cst_23 : f32 to vector<8x1xf32>
    %43 = arith.divf %41, %42 : vector<8x1xf32>
    %44 = vector.broadcast %43 : vector<8x1xf32> to vector<8x64xf32>
    %45 = arith.subf %39, %44 : vector<8x64xf32>
    %46 = vector.broadcast %43 : vector<8x1xf32> to vector<8x64xf32>
    %47 = arith.subf %39, %46 : vector<8x64xf32>
    %48 = arith.mulf %45, %47 : vector<8x64xf32>
    %cst_24 = arith.constant dense<0.000000e+00> : vector<8xf32>
    %49 = vector.multi_reduction <add>, %48, %cst_24 [1] : vector<8x64xf32> to vector<8xf32>
    %50 = vector.shape_cast %49 : vector<8xf32> to vector<8x1xf32>
    %cst_25 = arith.constant 6.400000e+01 : f32
    %51 = vector.broadcast %cst_25 : f32 to vector<8x1xf32>
    %52 = arith.divf %50, %51 : vector<8x1xf32>
    %53 = vector.broadcast %43 : vector<8x1xf32> to vector<8x64xf32>
    %54 = arith.subf %39, %53 : vector<8x64xf32>
    %cst_26 = arith.constant 9.99999974E-6 : f32
    %55 = vector.broadcast %cst_26 : f32 to vector<8x1xf32>
    %56 = arith.addf %52, %55 : vector<8x1xf32>
    %57 = math.rsqrt %56 : vector<8x1xf32>
    %58 = vector.broadcast %57 : vector<8x1xf32> to vector<8x64xf32>
    %59 = arith.mulf %54, %58 : vector<8x64xf32>
    %60 = vector.broadcast %4 : vector<1x64xf32> to vector<8x64xf32>
    %61 = arith.mulf %59, %60 : vector<8x64xf32>
    %62 = vector.broadcast %5 : vector<1x64xf32> to vector<8x64xf32>
    %63 = arith.addf %61, %62 : vector<8x64xf32>
    %cst_27 = arith.constant 5.000000e-01 : f32
    %64 = vector.broadcast %cst_27 : f32 to vector<8x64xf32>
    %65 = arith.mulf %64, %63 : vector<8x64xf32>
    %cst_28 = arith.constant 4.471500e-02 : f32
    %66 = vector.broadcast %cst_28 : f32 to vector<8x64xf32>
    %67 = arith.mulf %66, %63 : vector<8x64xf32>
    %68 = arith.mulf %67, %63 : vector<8x64xf32>
    %69 = arith.mulf %68, %63 : vector<8x64xf32>
    %70 = arith.addf %63, %69 : vector<8x64xf32>
    %cst_29 = arith.constant 0.797884583 : f32
    %71 = vector.broadcast %cst_29 : f32 to vector<8x64xf32>
    %72 = arith.mulf %71, %70 : vector<8x64xf32>
    %73 = math.tanh %72 : vector<8x64xf32>
    %cst_30 = arith.constant 1.000000e+00 : f32
    %74 = vector.broadcast %cst_30 : f32 to vector<8x64xf32>
    %75 = arith.addf %74, %73 : vector<8x64xf32>
    %76 = arith.mulf %65, %75 : vector<8x64xf32>
    %c0_31 = arith.constant 0 : index
    %c0_32 = arith.constant 0 : index
    %77 = vector.load %arg7[%c0_31, %c0_32] : memref<64x32xf32, #tpu.memory_space<vmem>>, vector<64x32xf32>
    %cst_33 = arith.constant dense<0.000000e+00> : vector<8x32xf32>
    %78 = tpu.matmul %76, %77, %cst_33 {dimension_numbers = #tpu.dot_dimension_numbers<[1], [0], [0], [1], [0, 0, 1, 1], [], []>} : vector<8x64xf32>, vector<64x32xf32>, vector<8x32xf32> -> vector<8x32xf32>
    %79 = vector.broadcast %6 : vector<1x32xf32> to vector<8x32xf32>
    %80 = arith.addf %78, %79 : vector<8x32xf32>
    %c0_34 = arith.constant 0 : index
    %c0_35 = arith.constant 0 : index
    %81 = vector.load %arg9[%c0_34, %c0_35] : memref<8x32xf32, #tpu.memory_space<vmem>>, vector<8x32xf32>
    tpu.vector_store %arg9[%c0_34, %c0_35], %80 {strides = array<i32>} : memref<8x32xf32, #tpu.memory_space<vmem>>, vector<8x32xf32>,
    return
  }
  func.func @transform_0(%arg0: i32) -> (i32, i32) {
    %c0_i32 = arith.constant 0 : i32
    %c0_i32_0 = arith.constant 0 : i32
    return %arg0, %c0_i32 : i32, i32
  }
  func.func @transform_1(%arg0: i32) -> (i32, i32, i32) {
    %c0_i32 = arith.constant 0 : i32
    %c0_i32_0 = arith.constant 0 : i32
    %c0_i32_1 = arith.constant 0 : i32
    return %arg0, %c0_i32, %c0_i32_0 : i32, i32, i32
  }
  func.func @transform_2(%arg0: i32) -> (i32, i32) {
    %c0_i32 = arith.constant 0 : i32
    %c0_i32_0 = arith.constant 0 : i32
    %c0_i32_1 = arith.constant 0 : i32
    return %c0_i32, %c0_i32_0 : i32, i32
  }
  func.func @transform_3(%arg0: i32) -> (i32, i32) {
    %c0_i32 = arith.constant 0 : i32
    %c0_i32_0 = arith.constant 0 : i32
    %c0_i32_1 = arith.constant 0 : i32
    return %c0_i32, %c0_i32_0 : i32, i32
  }
  func.func @transform_4(%arg0: i32) -> (i32, i32) {
    %c0_i32 = arith.constant 0 : i32
    %c0_i32_0 = arith.constant 0 : i32
    %c0_i32_1 = arith.constant 0 : i32
    return %c0_i32, %c0_i32_0 : i32, i32
  }
  func.func @transform_5(%arg0: i32) -> (i32, i32) {
    %c0_i32 = arith.constant 0 : i32
    %c0_i32_0 = arith.constant 0 : i32
    %c0_i32_1 = arith.constant 0 : i32
    return %c0_i32, %c0_i32_0 : i32, i32
  }
  func.func @transform_6(%arg0: i32) -> (i32, i32) {
    %c0_i32 = arith.constant 0 : i32
    %c0_i32_0 = arith.constant 0 : i32
    %c0_i32_1 = arith.constant 0 : i32
    return %c0_i32, %c0_i32_0 : i32, i32
  }
  func.func @transform_7(%arg0: i32) -> (i32, i32) {
    %c0_i32 = arith.constant 0 : i32
    %c0_i32_0 = arith.constant 0 : i32
    %c0_i32_1 = arith.constant 0 : i32
    return %c0_i32, %c0_i32_0 : i32, i32
  }
  func.func @transform_8(%arg0: i32) -> (i32, i32) {
    %c0_i32 = arith.constant 0 : i32
    %c0_i32_0 = arith.constant 0 : i32
    return %arg0, %c0_i32 : i32, i32
  }
}

</mosaic_0001>

<llo_original>
// kernel: user_attention_synthesis.1
$region0: #{user_attention_synthesis.1}
  #allocation0 [shape = 'u32[]', space=smem, size = 0x4, offset = 0x4, fixed_abs, tag = 'smem constant byte address 0x4 - core index']
  #allocation1 [shape = 'u32[144,128]{1,0:T(1,128)}', space=vmem, size = 0x12000, scoped, tag = 'internal scratch']
  %s0 = inlined_call_operand.vmem [shape: f32[8,16], index: 0, kind: input, shape index: {}]
  %s1 = inlined_call_operand.vmem [shape: f32[8,8,32], index: 1, kind: input, shape index: {}]
  %s2 = inlined_call_operand.vmem [shape: f32[16,16], index: 2, kind: input, shape index: {}]
  %s3 = inlined_call_operand.vmem [shape: f32[32,16], index: 3, kind: input, shape index: {}]
  %s4 = inlined_call_operand.vmem [shape: f32[16,64], index: 4, kind: input, shape index: {}]
  %s5 = inlined_call_operand.vmem [shape: f32[32,64], index: 5, kind: input, shape index: {}]
  %s6 = inlined_call_operand.vmem [shape: f32[64,32], index: 6, kind: input, shape index: {}]
  %s7 = inlined_call_operand.vmem [shape: f32[4,64], index: 7, kind: input, shape index: {}]
  %s8 = inlined_call_operand.hbm [shape: f32[8,32], index: 8, kind: output, shape index: {}]
  %s9 = sld [smem:[#allocation0]]
  $region42: #{user_attention_synthesis.1} parent=0
    _
  %s11 = ssub.s32 1, %s9
  %s12 = scalar_select 0, %s11, %s9
  $region1: #{user_attention_synthesis.1} parent=0
    #allocation2 [shape = 'u8[4096]{0}', space=vmem, size = 0x1000, scoped, tag = 'output window, operand 0, single buffered']
    #allocation3 [shape = 's32[1]{0}', space=sflag, size = 0x4, scoped, tag = 'scoped memory for user_attention_synthesis.1']
    %13 = vsyncpa [#allocation3], 0
    // Predicated region
    $region2: #{user_attention_synthesis.1} parent=1 // pred_check
      _
    $region3: #{user_attention_synthesis.1} parent=1 // pred_check_branch
      %15 = sbr.rel (0) target = $region5
    $region4: #{user_attention_synthesis.1} parent=1 // pred_region
      _
    $region5: #{user_attention_synthesis.1} parent=1 // pred_fallthru
      _
    // Predicated region
    $region6: #{user_attention_synthesis.1} parent=1 // pred_check
      _
    $region7: #{user_attention_synthesis.1} parent=1 // pred_check_branch
      %17 = sbr.rel (0) target = $region9
    $region8: #{user_attention_synthesis.1} parent=1 // pred_region
      _
    $region9: #{user_attention_synthesis.1} parent=1 // pred_fallthru
      _
    // Predicated region
    $region10: #{user_attention_synthesis.1} parent=1 // pred_check
      _
    $region11: #{user_attention_synthesis.1} parent=1 // pred_check_branch
      %19 = sbr.rel (0) target = $region13
    $region12: #{user_attention_synthesis.1} parent=1 // pred_region
      _
    $region13: #{user_attention_synthesis.1} parent=1 // pred_fallthru
      _
    // Predicated region
    $region14: #{user_attention_synthesis.1} parent=1 // pred_check
      _
    $region15: #{user_attention_synthesis.1} parent=1 // pred_check_branch
      %21 = sbr.rel (0) target = $region17
    $region16: #{user_attention_synthesis.1} parent=1 // pred_region
      _
    $region17: #{user_attention_synthesis.1} parent=1 // pred_fallthru
      _
    // Predicated region
    $region18: #{user_attention_synthesis.1} parent=1 // pred_check
      _
    $region19: #{user_attention_synthesis.1} parent=1 // pred_check_branch
      %23 = sbr.rel (0) target = $region21
    $region20: #{user_attention_synthesis.1} parent=1 // pred_region
      _
    $region21: #{user_attention_synthesis.1} parent=1 // pred_fallthru
      _
    // Predicated region
    $region22: #{user_attention_synthesis.1} parent=1 // pred_check
      _
    $region23: #{user_attention_synthesis.1} parent=1 // pred_check_branch
      %25 = sbr.rel (0) target = $region25
    $region24: #{user_attention_synthesis.1} parent=1 // pred_region
      _
    $region25: #{user_attention_synthesis.1} parent=1 // pred_fallthru
      _
    // Predicated region
    $region26: #{user_attention_synthesis.1} parent=1 // pred_check
      _
    $region27: #{user_attention_synthesis.1} parent=1 // pred_check_branch
      %27 = sbr.rel (0) target = $region29
    $region28: #{user_attention_synthesis.1} parent=1 // pred_region
      _
    $region29: #{user_attention_synthesis.1} parent=1 // pred_fallthru
      _
    // Predicated region
    $region30: #{user_attention_synthesis.1} parent=1 // pred_check
      _
    $region31: #{user_attention_synthesis.1} parent=1 // pred_check_branch
      %29 = sbr.rel (0) target = $region33
    $region32: #{user_attention_synthesis.1} parent=1 // pred_region
      _
    $region33: #{user_attention_synthesis.1} parent=1 // pred_fallthru
      _
    %v30 = vld [vmem:[%s0] sm:$0xff]
    %v31 = vld [vmem:[%s1] sm:$0xff]
    %v32 = vld [vmem:[%s1 + $0x8] sm:$0xff]
    %v33 = vld [vmem:[%s1 + $0x10] sm:$0xff]
    %v34 = vld [vmem:[%s1 + $0x18] sm:$0xff]
    %v35 = vld [vmem:[%s1 + $0x20] sm:$0xff]
    %v36 = vld [vmem:[%s1 + $0x28] sm:$0xff]
    %v37 = vld [vmem:[%s1 + $0x30] sm:$0xff]
    %v38 = vld [vmem:[%s1 + $0x38] sm:$0xff]
    %v39 = vld [vmem:[%s7] sm:$0xf]
    %v40 = vld [vmem:[%s2] sm:$0xff]
    %v41 = vld [vmem:[%s2 + $0x8] sm:$0xff]
    %vm42 = vcmask 130048
    %v44 = vsel %vm42, %v30, 0
    %46 = vmatprep.subr.mxu0 0.0
    %47 = vmatpush1.msra.mxu0 %v40
    %48 = vmatprep.subr.mxu0 0.0
    %49 = vmatpush1.msra.mxu0 %v41
    %50 = vmatprep.subr.mxu0 0.0
    %51 = vmatpush1.msra.mxu0 0.0
    %52 = vmatprep.subr.mxu0 0.0
    %53 = vmatpush1.msra.mxu0 0.0
    %54 = vmatprep.subr.mxu0 0.0
    %55 = vmatpush1.msra.mxu0 0.0
    %56 = vmatprep.subr.mxu0 0.0
    %57 = vmatpush1.msra.mxu0 0.0
    %58 = vmatprep.subr.mxu0 0.0
    %59 = vmatpush1.msra.mxu0 0.0
    %60 = vmatprep.subr.mxu0 0.0
    %61 = vmatpush1.msra.mxu0 0.0
    %62 = vmatprep.subr.mxu0 0.0
    %63 = vmatpush1.msra.mxu0 0.0
    %64 = vmatprep.subr.mxu0 0.0
    %65 = vmatpush1.msra.mxu0 0.0
    %66 = vmatprep.subr.mxu0 0.0
    %67 = vmatpush1.msra.mxu0 0.0
    %68 = vmatprep.subr.mxu0 0.0
    %69 = vmatpush1.msra.mxu0 0.0
    %70 = vmatprep.subr.mxu0 0.0
    %71 = vmatpush1.msra.mxu0 0.0
    %72 = vmatprep.subr.mxu0 0.0
    %73 = vmatpush1.msra.mxu0 0.0
    %74 = vmatprep.subr.mxu0 0.0
    %75 = vmatpush1.msra.mxu0 0.0
    %76 = vmatprep.subr.mxu0 0.0
    %77 = vmatpush1.msra.mxu0 0.0
    %78 = vmatprep.subr.mxu0 0.0
    %79 = vmatpush1.msra.mxu0 0.0
    %80 = vmatprep.subr.mxu0 0.0
    %81 = vmatpush1.msra.mxu0 0.0
    %82 = vmatprep.subr.mxu0 0.0
    %83 = vmatpush1.msra.mxu0 0.0
    %84 = vmatprep.subr.mxu0 0.0
    %85 = vmatpush1.msra.mxu0 0.0
    %86 = vmatprep.subr.mxu0 0.0
    %87 = vmatpush1.msra.mxu0 0.0
    %88 = vmatprep.subr.mxu0 0.0
    %89 = vmatpush1.msra.mxu0 0.0
    %90 = vmatprep.subr.mxu0 0.0
    %91 = vmatpush1.msra.mxu0 0.0
    %92 = vmatprep.subr.mxu0 0.0
    %93 = vmatpush1.msra.mxu0 0.0
    %94 = vmatprep.subr.mxu0 0.0
    %95 = vmatpush1.msra.mxu0 0.0
    %96 = vmatprep.subr.mxu0 0.0
    %97 = vmatpush1.msra.mxu0 0.0
    %98 = vmatprep.subr.mxu0 0.0
    %99 = vmatpush1.msra.mxu0 0.0
    %100 = vmatprep.subr.mxu0 0.0
    %101 = vmatpush1.msra.mxu0 0.0
    %102 = vmatprep.subr.mxu0 0.0
    %103 = vmatpush1.msra.mxu0 0.0
    %104 = vmatprep.subr.mxu0 0.0
    %105 = vmatpush1.msra.mxu0 0.0
    %106 = vmatprep.subr.mxu0 0.0
    %107 = vmatpush1.msra.mxu0 0.0
    %108 = vmatprep.subr.mxu0 0.0
    %109 = vmatpush1.msra.mxu0 0.0
    %110 = vmatprep.mubr.f32.mxu0 0.0
    %111 = vmatmul.mubr.f32.gmra.mrb[0].mxu0 %v44
    %v112 = vpop.f32.mrb[0].mxu0
    %v113 = vadd.f32 0.0, %v112
    %v114 = vpop.f32.mrb[0].mxu0
    %115 = vdwg.mxu0
    %v116 = vld [vmem:[%s3] sm:$0xff]
    %v117 = vld [vmem:[%s3 + $0x8] sm:$0xff]
    %v118 = vld [vmem:[%s3 + $0x10] sm:$0xff]
    %v119 = vld [vmem:[%s3 + $0x18] sm:$0xff]
    %vm120 = vcmask 261120
    %v122 = vsel %vm120, %v31, 0
    %v125 = vsel %vm120, %v32, 0
    %v128 = vsel %vm120, %v33, 0
    %v131 = vsel %vm120, %v34, 0
    %v134 = vsel %vm120, %v35, 0
    %v137 = vsel %vm120, %v36, 0
    %v140 = vsel %vm120, %v37, 0
    %v143 = vsel %vm120, %v38, 0
    %145 = vmatprep.subr.mxu0 0.0
    %146 = vmatpush1.msra.mxu0 %v116
    %147 = vmatprep.subr.mxu0 0.0
    %148 = vmatpush1.msra.mxu0 %v117
    %149 = vmatprep.subr.mxu0 0.0
    %150 = vmatpush1.msra.mxu0 %v118
    %151 = vmatprep.subr.mxu0 0.0
    %152 = vmatpush1.msra.mxu0 %v119
    %153 = vmatprep.subr.mxu0 0.0
    %154 = vmatpush1.msra.mxu0 0.0
    %155 = vmatprep.subr.mxu0 0.0
    %156 = vmatpush1.msra.mxu0 0.0
    %157 = vmatprep.subr.mxu0 0.0
    %158 = vmatpush1.msra.mxu0 0.0
    %159 = vmatprep.subr.mxu0 0.0
    %160 = vmatpush1.msra.mxu0 0.0
    %161 = vmatprep.subr.mxu0 0.0
    %162 = vmatpush1.msra.mxu0 0.0
    %163 = vmatprep.subr.mxu0 0.0
    %164 = vmatpush1.msra.mxu0 0.0
    %165 = vmatprep.subr.mxu0 0.0
    %166 = vmatpush1.msra.mxu0 0.0
    %167 = vmatprep.subr.mxu0 0.0
    %168 = vmatpush1.msra.mxu0 0.0
    %169 = vmatprep.subr.mxu0 0.0
    %170 = vmatpush1.msra.mxu0 0.0
    %171 = vmatprep.subr.mxu0 0.0
    %172 = vmatpush1.msra.mxu0 0.0
    %173 = vmatprep.subr.mxu0 0.0
    %174 = vmatpush1.msra.mxu0 0.0
    %175 = vmatprep.subr.mxu0 0.0
    %176 = vmatpush1.msra.mxu0 0.0
    %177 = vmatprep.subr.mxu0 0.0
    %178 = vmatpush1.msra.mxu0 0.0
    %179 = vmatprep.subr.mxu0 0.0
    %180 = vmatpush1.msra.mxu0 0.0
    %181 = vmatprep.subr.mxu0 0.0
    %182 = vmatpush1.msra.mxu0 0.0
    %183 = vmatprep.subr.mxu0 0.0
    %184 = vmatpush1.msra.mxu0 0.0
    %185 = vmatprep.subr.mxu0 0.0
    %186 = vmatpush1.msra.mxu0 0.0
    %187 = vmatprep.subr.mxu0 0.0
    %188 = vmatpush1.msra.mxu0 0.0
    %189 = vmatprep.subr.mxu0 0.0
    %190 = vmatpush1.msra.mxu0 0.0
    %191 = vmatprep.subr.mxu0 0.0
    %192 = vmatpush1.msra.mxu0 0.0
    %193 = vmatprep.subr.mxu0 0.0
    %194 = vmatpush1.msra.mxu0 0.0
    %195 = vmatprep.subr.mxu0 0.0
    %196 = vmatpush1.msra.mxu0 0.0
    %197 = vmatprep.subr.mxu0 0.0
    %198 = vmatpush1.msra.mxu0 0.0
    %199 = vmatprep.subr.mxu0 0.0
    %200 = vmatpush1.msra.mxu0 0.0
    %201 = vmatprep.subr.mxu0 0.0
    %202 = vmatpush1.msra.mxu0 0.0
    %203 = vmatprep.subr.mxu0 0.0
    %204 = vmatpush1.msra.mxu0 0.0
    %205 = vmatprep.subr.mxu0 0.0
    %206 = vmatpush1.msra.mxu0 0.0
    %207 = vmatprep.subr.mxu0 0.0
    %208 = vmatpush1.msra.mxu0 0.0
    %209 = vmatprep.mubr.f32.mxu0 0.0
    %210 = vmatmul.mubr.f32.gmra.mrb[0].mxu0 %v122
    %v211 = vpop.f32.mrb[0].mxu0
    %v212 = vadd.f32 0.0, %v211
    %v213 = vpop.f32.mrb[0].mxu0
    %214 = vmatprep.mubr.f32.mxu0 0.0
    %215 = vmatmul.mubr.f32.gmra.mrb[0].mxu0 %v125
    %v216 = vpop.f32.mrb[0].mxu0
    %v217 = vadd.f32 0.0, %v216
    %v218 = vpop.f32.mrb[0].mxu0
    %219 = vmatprep.mubr.f32.mxu0 0.0
    %220 = vmatmul.mubr.f32.gmra.mrb[0].mxu0 %v128
    %v221 = vpop.f32.mrb[0].mxu0
    %v222 = vadd.f32 0.0, %v221
    %v223 = vpop.f32.mrb[0].mxu0
    %224 = vmatprep.mubr.f32.mxu0 0.0
    %225 = vmatmul.mubr.f32.gmra.mrb[0].mxu0 %v131
    %v226 = vpop.f32.mrb[0].mxu0
    %v227 = vadd.f32 0.0, %v226
    %v228 = vpop.f32.mrb[0].mxu0
    %229 = vmatprep.mubr.f32.mxu0 0.0
    %230 = vmatmul.mubr.f32.gmra.mrb[0].mxu0 %v134
    %v231 = vpop.f32.mrb[0].mxu0
    %v232 = vadd.f32 0.0, %v231
    %v233 = vpop.f32.mrb[0].mxu0
    %234 = vmatprep.mubr.f32.mxu0 0.0
    %235 = vmatmul.mubr.f32.gmra.mrb[0].mxu0 %v137
    %v236 = vpop.f32.mrb[0].mxu0
    %v237 = vadd.f32 0.0, %v236
    %v238 = vpop.f32.mrb[0].mxu0
    %239 = vmatprep.mubr.f32.mxu0 0.0
    %240 = vmatmul.mubr.f32.gmra.mrb[0].mxu0 %v140
    %v241 = vpop.f32.mrb[0].mxu0
    %v242 = vadd.f32 0.0, %v241
    %v243 = vpop.f32.mrb[0].mxu0
    %244 = vmatprep.mubr.f32.mxu0 0.0
    %245 = vmatmul.mubr.f32.gmra.mrb[0].mxu0 %v143
    %v246 = vpop.f32.mrb[0].mxu0
    %v247 = vadd.f32 0.0, %v246
    %v248 = vpop.f32.mrb[0].mxu0
    %249 = vdwg.mxu0
    %v251 = vcombine.high %v113, %v113
    %v253 = vunpack.c.l.s4 1966171168
    %v254 = vunpack.c.0.s8 %v253
    %v255 = vlaneseq
    %v256 = vshrl.u32 %v255, 7
    %v257 = vsub.s32 %v254, %v256
    %v258 = vrot.slane %v113, %v257
    %v260 = vunpack.c.l.s4 1966171168
    %v261 = vunpack.c.0.s8 %v260
    %v262 = vlaneseq
    %v263 = vshrl.u32 %v262, 7
    %v264 = vsub.s32 %v261, %v263
    %v265 = vrot.slane %v251, %v264
    %v266 = vcombine.high %v258, %v258
    %v267 = vcombine.high %v265, %v265
    %v269 = vunpack.c.l.s4 1966171168
    %v270 = vunpack.c.0.s8 %v269
    %v271 = vlaneseq
    %v272 = vshrl.u32 %v271, 7
    %v273 = vsub.s32 %v270, %v272
    %v274 = vrot.slane %v258, %v273
    %v276 = vunpack.c.l.s4 1966171168
    %v277 = vunpack.c.0.s8 %v276
    %v278 = vlaneseq
    %v279 = vshrl.u32 %v278, 7
    %v280 = vsub.s32 %v277, %v279
    %v281 = vrot.slane %v265, %v280
    %v283 = vunpack.c.l.s4 1966171168
    %v284 = vunpack.c.0.s8 %v283
    %v285 = vlaneseq
    %v286 = vshrl.u32 %v285, 7
    %v287 = vsub.s32 %v284, %v286
    %v288 = vrot.slane %v266, %v287
    %v290 = vunpack.c.l.s4 1966171168
    %v291 = vunpack.c.0.s8 %v290
    %v292 = vlaneseq
    %v293 = vshrl.u32 %v292, 7
    %v294 = vsub.s32 %v291, %v293
    %v295 = vrot.slane %v267, %v294
    %v296 = vcombine.high %v274, %v274
    %v297 = vcombine.high %v281, %v281
    %v298 = vcombine.high %v288, %v288
    %v299 = vcombine.high %v295, %v295
    %v300 = vlaneseq
    %v301 = vshrl.u32 %v300, 7
    %v302 = vsub.s32 0, %v301
    %v303 = vrot.slane %v274, %v302
    %v304 = vlaneseq
    %v305 = vshrl.u32 %v304, 7
    %v306 = vsub.s32 0, %v305
    %v307 = vrot.slane %v288, %v306
    %v308 = vlaneseq
    %v309 = vshrl.u32 %v308, 7
    %v310 = vsub.s32 0, %v309
    %v311 = vrot.slane %v296, %v310
    %v312 = vlaneseq
    %v313 = vshrl.u32 %v312, 7
    %v314 = vsub.s32 0, %v313
    %v315 = vrot.slane %v298, %v314
    %v316 = vlaneseq
    %v317 = vshrl.u32 %v316, 7
    %v318 = vsub.s32 0, %v317
    %v319 = vrot.slane %v281, %v318
    %v320 = vlaneseq
    %v321 = vshrl.u32 %v320, 7
    %v322 = vsub.s32 0, %v321
    %v323 = vrot.slane %v295, %v322
    %v324 = vlaneseq
    %v325 = vshrl.u32 %v324, 7
    %v326 = vsub.s32 0, %v325
    %v327 = vrot.slane %v297, %v326
    %v328 = vlaneseq
    %v329 = vshrl.u32 %v328, 7
    %v330 = vsub.s32 0, %v329
    %v331 = vrot.slane %v299, %v330
    %v340 = vmul.f32 %v303, %v212
    %v341 = vmul.f32 %v307, %v217
    %v342 = vmul.f32 %v311, %v222
    %v343 = vmul.f32 %v315, %v227
    %v344 = vmul.f32 %v319, %v232
    %v345 = vmul.f32 %v323, %v237
    %v346 = vmul.f32 %v327, %v242
    %v347 = vmul.f32 %v331, %v247
    %v348 = vsel %vm42, %v340, 0.0
    %349 = vadd.xlane.f32.xlu0 %v348
    %v350 = vpop.xlane.xlu0 %349
    %v351 = vsel %vm42, %v341, 0.0
    %352 = vadd.xlane.f32.xlu0 %v351
    %v353 = vpop.xlane.xlu0 %352
    %v354 = vsel %vm42, %v342, 0.0
    %355 = vadd.xlane.f32.xlu0 %v354
    %v356 = vpop.xlane.xlu0 %355
    %v357 = vsel %vm42, %v343, 0.0
    %358 = vadd.xlane.f32.xlu0 %v357
    %v359 = vpop.xlane.xlu0 %358
    %v360 = vsel %vm42, %v344, 0.0
    %361 = vadd.xlane.f32.xlu0 %v360
    %v362 = vpop.xlane.xlu0 %361
    %v363 = vsel %vm42, %v345, 0.0
    %364 = vadd.xlane.f32.xlu0 %v363
    %v365 = vpop.xlane.xlu0 %364
    %v366 = vsel %vm42, %v346, 0.0
    %367 = vadd.xlane.f32.xlu0 %v366
    %v368 = vpop.xlane.xlu0 %367
    %v369 = vsel %vm42, %v347, 0.0
    %370 = vadd.xlane.f32.xlu0 %v369
    %v371 = vpop.xlane.xlu0 %370
    %v372 = vmul.f32 %v350, 0.25
    %v373 = vmul.f32 %v353, 0.25
    %v374 = vmul.f32 %v356, 0.25
    %v375 = vmul.f32 %v359, 0.25
    %v376 = vmul.f32 %v362, 0.25
    %v377 = vmul.f32 %v365, 0.25
    %v378 = vmul.f32 %v368, 0.25
    %v379 = vmul.f32 %v371, 0.25
    %v388 = vlaneseq
    %v389 = vand.u32 %v388, 127
    %v390 = vlaneseq
    %v391 = vshrl.u32 %v390, 7
    %v392 = vsub.s32 %v389, %v391
    %v393 = vrot.slane %v372, %v392
    %v394 = vlaneseq
    %v395 = vshrl.u32 %v394, 7
    %v396 = vsub.s32 %v389, %v395
    %v397 = vrot.slane %v373, %v396
    %v398 = vlaneseq
    %v399 = vshrl.u32 %v398, 7
    %v400 = vsub.s32 %v389, %v399
    %v401 = vrot.slane %v374, %v400
    %v402 = vlaneseq
    %v403 = vshrl.u32 %v402, 7
    %v404 = vsub.s32 %v389, %v403
    %v405 = vrot.slane %v375, %v404
    %v406 = vlaneseq
    %v407 = vshrl.u32 %v406, 7
    %v408 = vsub.s32 %v389, %v407
    %v409 = vrot.slane %v376, %v408
    %v410 = vlaneseq
    %v411 = vshrl.u32 %v410, 7
    %v412 = vsub.s32 %v389, %v411
    %v413 = vrot.slane %v377, %v412
    %v414 = vlaneseq
    %v415 = vshrl.u32 %v414, 7
    %v416 = vsub.s32 %v389, %v415
    %v417 = vrot.slane %v378, %v416
    %v418 = vlaneseq
    %v419 = vshrl.u32 %v418, 7
    %v420 = vsub.s32 %v389, %v419
    %v421 = vrot.slane %v379, %v420
    %vm422 = vcmask 1041409
    %v423 = vsel %vm422, %v397, %v393
    %vm424 = vcmask 1042434
    %v425 = vsel %vm424, %v401, %v423
    %vm426 = vcmask 1043459
    %v427 = vsel %vm426, %v405, %v425
    %vm428 = vcmask 1044484
    %v429 = vsel %vm428, %v409, %v427
    %vm430 = vcmask 1045509
    %v431 = vsel %vm430, %v413, %v429
    %vm432 = vcmask 1046534
    %v433 = vsel %vm432, %v417, %v431
    %vm434 = vcmask 1047559
    %v435 = vsel %vm434, %v421, %v433
    %vm437 = vcmask 64512
    %v438 = vsel %vm437, %v435, -inf
    %439 = vmax.xlane.f32.xlu0 %v438
    %v440 = vpop.xlane.xlu0 %439
    %v442 = vlaneseq
    %v443 = vshrl.u32 %v442, 7
    %v444 = vsub.s32 0, %v443
    %v445 = vrot.slane %v440, %v444
    %v446 = vlaneseq
    %v447 = vshrl.u32 %v446, 7
    %v448 = vsub.s32 1, %v447
    %v449 = vrot.slane %v440, %v448
    %v450 = vlaneseq
    %v451 = vshrl.u32 %v450, 7
    %v452 = vsub.s32 2, %v451
    %v453 = vrot.slane %v440, %v452
    %v454 = vlaneseq
    %v455 = vshrl.u32 %v454, 7
    %v456 = vsub.s32 3, %v455
    %v457 = vrot.slane %v440, %v456
    %v458 = vlaneseq
    %v459 = vshrl.u32 %v458, 7
    %v460 = vsub.s32 4, %v459
    %v461 = vrot.slane %v440, %v460
    %v462 = vlaneseq
    %v463 = vshrl.u32 %v462, 7
    %v464 = vsub.s32 5, %v463
    %v465 = vrot.slane %v440, %v464
    %v466 = vlaneseq
    %v467 = vshrl.u32 %v466, 7
    %v468 = vsub.s32 6, %v467
    %v469 = vrot.slane %v440, %v468
    %v470 = vlaneseq
    %v471 = vshrl.u32 %v470, 7
    %v472 = vsub.s32 7, %v471
    %v473 = vrot.slane %v440, %v472
    %v482 = vsub.f32 %v372, %v445
    %v483 = vsub.f32 %v373, %v449
    %v484 = vsub.f32 %v374, %v453
    %v485 = vsub.f32 %v375, %v457
    %v486 = vsub.f32 %v376, %v461
    %v487 = vsub.f32 %v377, %v465
    %v488 = vsub.f32 %v378, %v469
    %v489 = vsub.f32 %v379, %v473
    %v490 = vmul.f32 %v482, 1.442695
    %v491 = vpow.pop %v490
    %v492 = vmul.f32 %v483, 1.442695
    %v493 = vpow.pop %v492
    %v494 = vmul.f32 %v484, 1.442695
    %v495 = vpow.pop %v494
    %v496 = vmul.f32 %v485, 1.442695
    %v497 = vpow.pop %v496
    %v498 = vmul.f32 %v486, 1.442695
    %v499 = vpow.pop %v498
    %v500 = vmul.f32 %v487, 1.442695
    %v501 = vpow.pop %v500
    %v502 = vmul.f32 %v488, 1.442695
    %v503 = vpow.pop %v502
    %v504 = vmul.f32 %v489, 1.442695
    %v505 = vpow.pop %v504
    %514 = vset.pattern.permute.xlu0 0
    %515 = vperm.xlu0 %514, %v491
    %v516 = vpop.permute.xlu0 %515
    %517 = vset.pattern.permute.xlu0 0
    %518 = vperm.xlu0 %517, %v493
    %v519 = vpop.permute.xlu0 %518
    %520 = vset.pattern.permute.xlu0 0
    %521 = vperm.xlu0 %520, %v495
    %v522 = vpop.permute.xlu0 %521
    %523 = vset.pattern.permute.xlu0 0
    %524 = vperm.xlu0 %523, %v497
    %v525 = vpop.permute.xlu0 %524
    %526 = vset.pattern.permute.xlu0 0
    %527 = vperm.xlu0 %526, %v499
    %v528 = vpop.permute.xlu0 %527
    %529 = vset.pattern.permute.xlu0 0
    %530 = vperm.xlu0 %529, %v501
    %v531 = vpop.permute.xlu0 %530
    %532 = vset.pattern.permute.xlu0 0
    %533 = vperm.xlu0 %532, %v503
    %v534 = vpop.permute.xlu0 %533
    %535 = vset.pattern.permute.xlu0 0
    %536 = vperm.xlu0 %535, %v505
    %v537 = vpop.permute.xlu0 %536
    %v538 = vlaneseq
    %v539 = vshrl.u32 %v538, 7
    %v540 = vsub.s32 %v389, %v539
    %v541 = vrot.slane %v516, %v540
    %v542 = vlaneseq
    %v543 = vshrl.u32 %v542, 7
    %v544 = vsub.s32 %v389, %v543
    %v545 = vrot.slane %v519, %v544
    %v546 = vlaneseq
    %v547 = vshrl.u32 %v546, 7
    %v548 = vsub.s32 %v389, %v547
    %v549 = vrot.slane %v522, %v548
    %v550 = vlaneseq
    %v551 = vshrl.u32 %v550, 7
    %v552 = vsub.s32 %v389, %v551
    %v553 = vrot.slane %v525, %v552
    %v554 = vlaneseq
    %v555 = vshrl.u32 %v554, 7
    %v556 = vsub.s32 %v389, %v555
    %v557 = vrot.slane %v528, %v556
    %v558 = vlaneseq
    %v559 = vshrl.u32 %v558, 7
    %v560 = vsub.s32 %v389, %v559
    %v561 = vrot.slane %v531, %v560
    %v562 = vlaneseq
    %v563 = vshrl.u32 %v562, 7
    %v564 = vsub.s32 %v389, %v563
    %v565 = vrot.slane %v534, %v564
    %v566 = vlaneseq
    %v567 = vshrl.u32 %v566, 7
    %v568 = vsub.s32 %v389, %v567
    %v569 = vrot.slane %v537, %v568
    %v570 = vsel %vm422, %v545, %v541
    %v571 = vsel %vm424, %v549, %v570
    %v572 = vsel %vm426, %v553, %v571
    %v573 = vsel %vm428, %v557, %v572
    %v574 = vsel %vm430, %v561, %v573
    %v575 = vsel %vm432, %v565, %v574
    %v576 = vsel %vm434, %v569, %v575
    %v578 = vsel %vm437, %v576, 0.0
    %579 = vadd.xlane.f32.xlu0 %v578
    %v580 = vpop.xlane.xlu0 %579
    %v581 = vrcp.pop %v580
    %v583 = vlaneseq
    %v584 = vshrl.u32 %v583, 7
    %v585 = vsub.s32 0, %v584
    %v586 = vrot.slane %v581, %v585
    %v587 = vlaneseq
    %v588 = vshrl.u32 %v587, 7
    %v589 = vsub.s32 1, %v588
    %v590 = vrot.slane %v581, %v589
    %v591 = vlaneseq
    %v592 = vshrl.u32 %v591, 7
    %v593 = vsub.s32 2, %v592
    %v594 = vrot.slane %v581, %v593
    %v595 = vlaneseq
    %v596 = vshrl.u32 %v595, 7
    %v597 = vsub.s32 3, %v596
    %v598 = vrot.slane %v581, %v597
    %v599 = vlaneseq
    %v600 = vshrl.u32 %v599, 7
    %v601 = vsub.s32 4, %v600
    %v602 = vrot.slane %v581, %v601
    %v603 = vlaneseq
    %v604 = vshrl.u32 %v603, 7
    %v605 = vsub.s32 5, %v604
    %v606 = vrot.slane %v581, %v605
    %v607 = vlaneseq
    %v608 = vshrl.u32 %v607, 7
    %v609 = vsub.s32 6, %v608
    %v610 = vrot.slane %v581, %v609
    %v611 = vlaneseq
    %v612 = vshrl.u32 %v611, 7
    %v613 = vsub.s32 7, %v612
    %v614 = vrot.slane %v581, %v613
    %v623 = vmul.f32 %v491, %v586
    %v624 = vmul.f32 %v493, %v590
    %v625 = vmul.f32 %v495, %v594
    %v626 = vmul.f32 %v497, %v598
    %v627 = vmul.f32 %v499, %v602
    %v628 = vmul.f32 %v501, %v606
    %v629 = vmul.f32 %v503, %v610
    %v630 = vmul.f32 %v505, %v614
    %632 = vset.pattern.permute.xlu0 0
    %633 = vperm.xlu0 %632, %v623
    %v634 = vpop.permute.xlu0 %633
    %637 = vset.pattern.permute.xlu0 0
    %638 = vperm.xlu0 %637, %v624
    %v639 = vpop.permute.xlu0 %638
    %642 = vset.pattern.permute.xlu0 0
    %643 = vperm.xlu0 %642, %v625
    %v644 = vpop.permute.xlu0 %643
    %647 = vset.pattern.permute.xlu0 0
    %648 = vperm.xlu0 %647, %v626
    %v649 = vpop.permute.xlu0 %648
    %652 = vset.pattern.permute.xlu0 0
    %653 = vperm.xlu0 %652, %v627
    %v654 = vpop.permute.xlu0 %653
    %657 = vset.pattern.permute.xlu0 0
    %658 = vperm.xlu0 %657, %v628
    %v659 = vpop.permute.xlu0 %658
    %662 = vset.pattern.permute.xlu0 0
    %663 = vperm.xlu0 %662, %v629
    %v664 = vpop.permute.xlu0 %663
    %667 = vset.pattern.permute.xlu0 0
    %668 = vperm.xlu0 %667, %v630
    %v669 = vpop.permute.xlu0 %668
    %v671 = vmul.f32 %v634, %v31
    %v672 = vmul.f32 %v639, %v32
    %v673 = vmul.f32 %v644, %v33
    %v674 = vmul.f32 %v649, %v34
    %v675 = vmul.f32 %v654, %v35
    %v676 = vmul.f32 %v659, %v36
    %v677 = vmul.f32 %v664, %v37
    %v678 = vmul.f32 %v669, %v38
    %v679 = vsel %vm120, %v671, 0.0
    %v680 = vrot.slane %v679, 4
    %v681 = vadd.f32 %v679, %v680
    %v682 = vrot.slane %v681, 2
    %v683 = vadd.f32 %v681, %v682
    %v684 = vrot.slane %v683, 1
    %v685 = vadd.f32 %v683, %v684
    %v686 = vsel %vm120, %v672, 0.0
    %v687 = vrot.slane %v686, 4
    %v688 = vadd.f32 %v686, %v687
    %v689 = vrot.slane %v688, 2
    %v690 = vadd.f32 %v688, %v689
    %v691 = vrot.slane %v690, 1
    %v692 = vadd.f32 %v690, %v691
    %v693 = vsel %vm120, %v673, 0.0
    %v694 = vrot.slane %v693, 4
    %v695 = vadd.f32 %v693, %v694
    %v696 = vrot.slane %v695, 2
    %v697 = vadd.f32 %v695, %v696
    %v698 = vrot.slane %v697, 1
    %v699 = vadd.f32 %v697, %v698
    %v700 = vsel %vm120, %v674, 0.0
    %v701 = vrot.slane %v700, 4
    %v702 = vadd.f32 %v700, %v701
    %v703 = vrot.slane %v702, 2
    %v704 = vadd.f32 %v702, %v703
    %v705 = vrot.slane %v704, 1
    %v706 = vadd.f32 %v704, %v705
    %v707 = vsel %vm120, %v675, 0.0
    %v708 = vrot.slane %v707, 4
    %v709 = vadd.f32 %v707, %v708
    %v710 = vrot.slane %v709, 2
    %v711 = vadd.f32 %v709, %v710
    %v712 = vrot.slane %v711, 1
    %v713 = vadd.f32 %v711, %v712
    %v714 = vsel %vm120, %v676, 0.0
    %v715 = vrot.slane %v714, 4
    %v716 = vadd.f32 %v714, %v715
    %v717 = vrot.slane %v716, 2
    %v718 = vadd.f32 %v716, %v717
    %v719 = vrot.slane %v718, 1
    %v720 = vadd.f32 %v718, %v719
    %v721 = vsel %vm120, %v677, 0.0
    %v722 = vrot.slane %v721, 4
    %v723 = vadd.f32 %v721, %v722
    %v724 = vrot.slane %v723, 2
    %v725 = vadd.f32 %v723, %v724
    %v726 = vrot.slane %v725, 1
    %v727 = vadd.f32 %v725, %v726
    %v728 = vsel %vm120, %v678, 0.0
    %v729 = vrot.slane %v728, 4
    %v730 = vadd.f32 %v728, %v729
    %v731 = vrot.slane %v730, 2
    %v732 = vadd.f32 %v730, %v731
    %v733 = vrot.slane %v732, 1
    %v734 = vadd.f32 %v732, %v733
    %v735 = vld [vmem:[%s4] sm:$0xff]
    %v736 = vld [vmem:[%s4 + $0x8] sm:$0xff]
    %v737 = vld [vmem:[%s5] sm:$0xff]
    %v738 = vld [vmem:[%s5 + $0x8] sm:$0xff]
    %v739 = vld [vmem:[%s5 + $0x10] sm:$0xff]
    %v740 = vld [vmem:[%s5 + $0x18] sm:$0xff]
    %v749 = vsel %vm422, %v692, %v685
    %v750 = vsel %vm424, %v699, %v749
    %v751 = vsel %vm426, %v706, %v750
    %v752 = vsel %vm428, %v713, %v751
    %v753 = vsel %vm430, %v720, %v752
    %v754 = vsel %vm432, %v727, %v753
    %v755 = vsel %vm434, %v734, %v754
    %v756 = vsel %vm120, %v755, 0
    %758 = vmatprep.subr.mxu0 0.0
    %759 = vmatpush1.msra.mxu0 %v737
    %760 = vmatprep.subr.mxu0 0.0
    %761 = vmatpush1.msra.mxu0 %v738
    %762 = vmatprep.subr.mxu0 0.0
    %763 = vmatpush1.msra.mxu0 %v739
    %764 = vmatprep.subr.mxu0 0.0
    %765 = vmatpush1.msra.mxu0 %v740
    %766 = vmatprep.subr.mxu0 0.0
    %767 = vmatpush1.msra.mxu0 0.0
    %768 = vmatprep.subr.mxu0 0.0
    %769 = vmatpush1.msra.mxu0 0.0
    %770 = vmatprep.subr.mxu0 0.0
    %771 = vmatpush1.msra.mxu0 0.0
    %772 = vmatprep.subr.mxu0 0.0
    %773 = vmatpush1.msra.mxu0 0.0
    %774 = vmatprep.subr.mxu0 0.0
    %775 = vmatpush1.msra.mxu0 0.0
    %776 = vmatprep.subr.mxu0 0.0
    %777 = vmatpush1.msra.mxu0 0.0
    %778 = vmatprep.subr.mxu0 0.0
    %779 = vmatpush1.msra.mxu0 0.0
    %780 = vmatprep.subr.mxu0 0.0
    %781 = vmatpush1.msra.mxu0 0.0
    %782 = vmatprep.subr.mxu0 0.0
    %783 = vmatpush1.msra.mxu0 0.0
    %784 = vmatprep.subr.mxu0 0.0
    %785 = vmatpush1.msra.mxu0 0.0
    %786 = vmatprep.subr.mxu0 0.0
    %787 = vmatpush1.msra.mxu0 0.0
    %788 = vmatprep.subr.mxu0 0.0
    %789 = vmatpush1.msra.mxu0 0.0
    %790 = vmatprep.subr.mxu0 0.0
    %791 = vmatpush1.msra.mxu0 0.0
    %792 = vmatprep.subr.mxu0 0.0
    %793 = vmatpush1.msra.mxu0 0.0
    %794 = vmatprep.subr.mxu0 0.0
    %795 = vmatpush1.msra.mxu0 0.0
    %796 = vmatprep.subr.mxu0 0.0
    %797 = vmatpush1.msra.mxu0 0.0
    %798 = vmatprep.subr.mxu0 0.0
    %799 = vmatpush1.msra.mxu0 0.0
    %800 = vmatprep.subr.mxu0 0.0
    %801 = vmatpush1.msra.mxu0 0.0
    %802 = vmatprep.subr.mxu0 0.0
    %803 = vmatpush1.msra.mxu0 0.0
    %804 = vmatprep.subr.mxu0 0.0
    %805 = vmatpush1.msra.mxu0 0.0
    %806 = vmatprep.subr.mxu0 0.0
    %807 = vmatpush1.msra.mxu0 0.0
    %808 = vmatprep.subr.mxu0 0.0
    %809 = vmatpush1.msra.mxu0 0.0
    %810 = vmatprep.subr.mxu0 0.0
    %811 = vmatpush1.msra.mxu0 0.0
    %812 = vmatprep.subr.mxu0 0.0
    %813 = vmatpush1.msra.mxu0 0.0
    %814 = vmatprep.subr.mxu0 0.0
    %815 = vmatpush1.msra.mxu0 0.0
    %816 = vmatprep.subr.mxu0 0.0
    %817 = vmatpush1.msra.mxu0 0.0
    %818 = vmatprep.subr.mxu0 0.0
    %819 = vmatpush1.msra.mxu0 0.0
    %820 = vmatprep.subr.mxu0 0.0
    %821 = vmatpush1.msra.mxu0 0.0
    %822 = vmatprep.mubr.f32.mxu0 0.0
    %823 = vmatmul.mubr.f32.gmra.mrb[0].mxu0 %v756
    %v824 = vpop.f32.mrb[0].mxu0
    %v825 = vadd.f32 0.0, %v824
    %v826 = vpop.f32.mrb[0].mxu0
    %827 = vdwg.mxu0
    %828 = vmatprep.subr.mxu0 0.0
    %829 = vmatpush1.msra.mxu0 %v735
    %830 = vmatprep.subr.mxu0 0.0
    %831 = vmatpush1.msra.mxu0 %v736
    %832 = vmatprep.subr.mxu0 0.0
    %833 = vmatpush1.msra.mxu0 0.0
    %834 = vmatprep.subr.mxu0 0.0
    %835 = vmatpush1.msra.mxu0 0.0
    %836 = vmatprep.subr.mxu0 0.0
    %837 = vmatpush1.msra.mxu0 0.0
    %838 = vmatprep.subr.mxu0 0.0
    %839 = vmatpush1.msra.mxu0 0.0
    %840 = vmatprep.subr.mxu0 0.0
    %841 = vmatpush1.msra.mxu0 0.0
    %842 = vmatprep.subr.mxu0 0.0
    %843 = vmatpush1.msra.mxu0 0.0
    %844 = vmatprep.subr.mxu0 0.0
    %845 = vmatpush1.msra.mxu0 0.0
    %846 = vmatprep.subr.mxu0 0.0
    %847 = vmatpush1.msra.mxu0 0.0
    %848 = vmatprep.subr.mxu0 0.0
    %849 = vmatpush1.msra.mxu0 0.0
    %850 = vmatprep.subr.mxu0 0.0
    %851 = vmatpush1.msra.mxu0 0.0
    %852 = vmatprep.subr.mxu0 0.0
    %853 = vmatpush1.msra.mxu0 0.0
    %854 = vmatprep.subr.mxu0 0.0
    %855 = vmatpush1.msra.mxu0 0.0
    %856 = vmatprep.subr.mxu0 0.0
    %857 = vmatpush1.msra.mxu0 0.0
    %858 = vmatprep.subr.mxu0 0.0
    %859 = vmatpush1.msra.mxu0 0.0
    %860 = vmatprep.subr.mxu0 0.0
    %861 = vmatpush1.msra.mxu0 0.0
    %862 = vmatprep.subr.mxu0 0.0
    %863 = vmatpush1.msra.mxu0 0.0
    %864 = vmatprep.subr.mxu0 0.0
    %865 = vmatpush1.msra.mxu0 0.0
    %866 = vmatprep.subr.mxu0 0.0
    %867 = vmatpush1.msra.mxu0 0.0
    %868 = vmatprep.subr.mxu0 0.0
    %869 = vmatpush1.msra.mxu0 0.0
    %870 = vmatprep.subr.mxu0 0.0
    %871 = vmatpush1.msra.mxu0 0.0
    %872 = vmatprep.subr.mxu0 0.0
    %873 = vmatpush1.msra.mxu0 0.0
    %874 = vmatprep.subr.mxu0 0.0
    %875 = vmatpush1.msra.mxu0 0.0
    %876 = vmatprep.subr.mxu0 0.0
    %877 = vmatpush1.msra.mxu0 0.0
    %878 = vmatprep.subr.mxu0 0.0
    %879 = vmatpush1.msra.mxu0 0.0
    %880 = vmatprep.subr.mxu0 0.0
    %881 = vmatpush1.msra.mxu0 0.0
    %882 = vmatprep.subr.mxu0 0.0
    %883 = vmatpush1.msra.mxu0 0.0
    %884 = vmatprep.subr.mxu0 0.0
    %885 = vmatpush1.msra.mxu0 0.0
    %886 = vmatprep.subr.mxu0 0.0
    %887 = vmatpush1.msra.mxu0 0.0
    %888 = vmatprep.subr.mxu0 0.0
    %889 = vmatpush1.msra.mxu0 0.0
    %890 = vmatprep.subr.mxu0 0.0
    %891 = vmatpush1.msra.mxu0 0.0
    %892 = vmatprep.mubr.f32.mxu0 0.0
    %893 = vmatmul.mubr.f32.gmra.mrb[0].mxu0 %v44
    %v894 = vpop.f32.mrb[0].mxu0
    %v895 = vadd.f32 %v825, %v894
    %v896 = vpop.f32.mrb[0].mxu0
    %897 = vdwg.mxu0
    %v898 = vlaneseq
    %v899 = vshrl.u32 %v898, 7
    %v900 = vsub.s32 0, %v899
    %v901 = vrot.slane %v39, %v900
    %v902 = vadd.f32 %v895, %v901
    %vm903 = vcmask 523264
    %v904 = vsel %vm903, %v902, 0.0
    %905 = vadd.xlane.f32.xlu0 %v904
    %v906 = vpop.xlane.xlu0 %905
    %v907 = vrcp.pop 64.0
    %v908 = vmul.f32 %v906, %v907
    %v909 = vsub.f32 %v902, %v908
    %v910 = vmul.f32 %v909, %v909
    %v911 = vsel %vm903, %v910, 0.0
    %912 = vadd.xlane.f32.xlu0 %v911
    %v913 = vpop.xlane.xlu0 %912
    %v914 = vmul.f32 %v913, %v907
    %v915 = vadd.f32 %v914, 1e-05
    %v916 = vrsqrt.pop %v915
    %v917 = vmul.f32 %v909, %v916
    %v918 = vlaneseq
    %v919 = vshrl.u32 %v918, 7
    %v920 = vsub.s32 1, %v919
    %v921 = vrot.slane %v39, %v920
    %v922 = vmul.f32 %v917, %v921
    %v923 = vlaneseq
    %v924 = vshrl.u32 %v923, 7
    %v925 = vsub.s32 2, %v924
    %v926 = vrot.slane %v39, %v925
    %v927 = vadd.f32 %v922, %v926
    %v928 = vmul.f32 %v927, 0.5
    %v929 = vmul.f32 %v927, 0.044715
    %v930 = vmul.f32 %v929, %v927
    %v931 = vmul.f32 %v930, %v927
    %v932 = vadd.f32 %v927, %v931
    %v933 = vmul.f32 %v932, 0.7978846
    %v934 = vtanh.pop %v933
    %v935 = vadd.f32 %v934, 1.0
    %v936 = vmul.f32 %v928, %v935
    %v937 = vld [vmem:[%s6] sm:$0xff]
    %v938 = vld [vmem:[%s6 + $0x8] sm:$0xff]
    %v939 = vld [vmem:[%s6 + $0x10] sm:$0xff]
    %v940 = vld [vmem:[%s6 + $0x18] sm:$0xff]
    %v941 = vld [vmem:[%s6 + $0x20] sm:$0xff]
    %v942 = vld [vmem:[%s6 + $0x28] sm:$0xff]
    %v943 = vld [vmem:[%s6 + $0x30] sm:$0xff]
    %v944 = vld [vmem:[%s6 + $0x38] sm:$0xff]
    %v945 = vlaneseq
    %v946 = vshrl.u32 %v945, 7
    %v947 = vsub.s32 3, %v946
    %v948 = vrot.slane %v39, %v947
    %v950 = vsel %vm903, %v936, 0
    %952 = vmatprep.subr.mxu0 0.0
    %953 = vmatpush1.msra.mxu0 %v937
    %954 = vmatprep.subr.mxu0 0.0
    %955 = vmatpush1.msra.mxu0 %v938
    %956 = vmatprep.subr.mxu0 0.0
    %957 = vmatpush1.msra.mxu0 %v939
    %958 = vmatprep.subr.mxu0 0.0
    %959 = vmatpush1.msra.mxu0 %v940
    %960 = vmatprep.subr.mxu0 0.0
    %961 = vmatpush1.msra.mxu0 %v941
    %962 = vmatprep.subr.mxu0 0.0
    %963 = vmatpush1.msra.mxu0 %v942
    %964 = vmatprep.subr.mxu0 0.0
    %965 = vmatpush1.msra.mxu0 %v943
    %966 = vmatprep.subr.mxu0 0.0
    %967 = vmatpush1.msra.mxu0 %v944
    %968 = vmatprep.subr.mxu0 0.0
    %969 = vmatpush1.msra.mxu0 0.0
    %970 = vmatprep.subr.mxu0 0.0
    %971 = vmatpush1.msra.mxu0 0.0
    %972 = vmatprep.subr.mxu0 0.0
    %973 = vmatpush1.msra.mxu0 0.0
    %974 = vmatprep.subr.mxu0 0.0
    %975 = vmatpush1.msra.mxu0 0.0
    %976 = vmatprep.subr.mxu0 0.0
    %977 = vmatpush1.msra.mxu0 0.0
    %978 = vmatprep.subr.mxu0 0.0
    %979 = vmatpush1.msra.mxu0 0.0
    %980 = vmatprep.subr.mxu0 0.0
    %981 = vmatpush1.msra.mxu0 0.0
    %982 = vmatprep.subr.mxu0 0.0
    %983 = vmatpush1.msra.mxu0 0.0
    %984 = vmatprep.subr.mxu0 0.0
    %985 = vmatpush1.msra.mxu0 0.0
    %986 = vmatprep.subr.mxu0 0.0
    %987 = vmatpush1.msra.mxu0 0.0
    %988 = vmatprep.subr.mxu0 0.0
    %989 = vmatpush1.msra.mxu0 0.0
    %990 = vmatprep.subr.mxu0 0.0
    %991 = vmatpush1.msra.mxu0 0.0
    %992 = vmatprep.subr.mxu0 0.0
    %993 = vmatpush1.msra.mxu0 0.0
    %994 = vmatprep.subr.mxu0 0.0
    %995 = vmatpush1.msra.mxu0 0.0
    %996 = vmatprep.subr.mxu0 0.0
    %997 = vmatpush1.msra.mxu0 0.0
    %998 = vmatprep.subr.mxu0 0.0
    %999 = vmatpush1.msra.mxu0 0.0
    %1000 = vmatprep.subr.mxu0 0.0
    %1001 = vmatpush1.msra.mxu0 0.0
    %1002 = vmatprep.subr.mxu0 0.0
    %1003 = vmatpush1.msra.mxu0 0.0
    %1004 = vmatprep.subr.mxu0 0.0
    %1005 = vmatpush1.msra.mxu0 0.0
    %1006 = vmatprep.subr.mxu0 0.0
    %1007 = vmatpush1.msra.mxu0 0.0
    %1008 = vmatprep.subr.mxu0 0.0
    %1009 = vmatpush1.msra.mxu0 0.0
    %1010 = vmatprep.subr.mxu0 0.0
    %1011 = vmatpush1.msra.mxu0 0.0
    %1012 = vmatprep.subr.mxu0 0.0
    %1013 = vmatpush1.msra.mxu0 0.0
    %1014 = vmatprep.subr.mxu0 0.0
    %1015 = vmatpush1.msra.mxu0 0.0
    %1016 = vmatprep.mubr.f32.mxu0 0.0
    %1017 = vmatmul.mubr.f32.gmra.mrb[0].mxu0 %v950
    %v1018 = vpop.f32.mrb[0].mxu0
    %v1019 = vadd.f32 %v948, %v1018
    %v1020 = vpop.f32.mrb[0].mxu0
    %1021 = vdwg.mxu0
    %1022 = vst.msk [vmem:[#allocation2] sm:$0xff] %vm120, %v1019
    // Predicated region
    $region34: #{user_attention_synthesis.1} parent=1 // pred_check
      _
    $region35: #{user_attention_synthesis.1} parent=1 // pred_check_branch
      %1024 = sbr.rel (0) target = $region37
    $region36: #{user_attention_synthesis.1} parent=1 // pred_region
      %s1026 = ssub.s32 128, 128
      %1027 = vsyncadd [#allocation3], %s1026
      %s1029 = sshll.u32 [#allocation2], 4
      %s1030 = int_to_ptr.vmem [resolvable:$true] %s1029
      %1032 = dma.vmem_to_hbm [thread:$0]  %s1030, 128, %s8, [#allocation3]
    $region37: #{user_attention_synthesis.1} parent=1 // pred_fallthru
      _
    // Predicated region
    $region38: #{user_attention_synthesis.1} parent=1 // pred_check
      _
    $region39: #{user_attention_synthesis.1} parent=1 // pred_check_branch
      %1034 = sbr.rel (0) target = $region41
    $region40: #{user_attention_synthesis.1} parent=1 // pred_region
      %1035 = dma.done [#allocation3], 128
    $region41: #{user_attention_synthesis.1} parent=1 // pred_fallthru
      _
    %1036 = vsyncpa [#allocation3], 1

</llo_original>
